<compile_context>
chip_gen: v7x
topology: tpu7x:2x2x1
jax: 0.10.0
libtpu: 0.0.40
codegen_flags: <defaults>
</compile_context>

<pallas_src>
import functools

import jax
import jax.numpy as jnp
from jax.experimental import pallas as pl
from jax.experimental.pallas import tpu as pltpu


def _sublane_granule(dtype):
    """Sublane granularity for the second-minor block dim (8 f32 / 16 bf16 / 32 int8)."""
    return max(8, 32 // jnp.dtype(dtype).itemsize)


def _vmem_budget_bytes():
    """Generation-aware VMEM budget: ~75% of capacity, capped at 96 MiB.

    v5e/v6e (128 MiB)  -> 96 MiB;  v7x (64 MiB) -> 48 MiB.
    Falls back to a conservative 48 MiB if the query is unavailable.
    """
    try:
        cap = int(pltpu.get_tpu_info().vmem_capacity_bytes)
    except Exception:  # pragma: no cover - conservative default
        cap = 64 * 1024 * 1024
    return min(int(cap * 3 // 4), 96 * 1024 * 1024)


def _pick_row_tile(m, granule, budget_rows):
    """Largest row tile that fits the VMEM budget, rounded to the sublane granule."""
    if m <= granule:
        return m                                   # full (small) extent is always legal
    tile = min(m, max(granule, budget_rows))
    return max(granule, (tile // granule) * granule)


def _d2s_kernel(x_ref, o_ref, *, bs, w, w_out, acc_dtype, lane_dense):
    # x_ref : (1, bs*bs, m_blk, W)   rows m = co*H + hh; slab g = b1*bs + b2
    # o_ref : (1, m_blk, bs*W*bs)    columns ordered (b1, ww, b2)
    #
    # One-hot column-scatter matrices sw[b2][ww, o] = 1 iff o == ww*bs + b2,
    # generated in-kernel (VPU) -> no HBM constant, no double-buffered copy.
    rows = jax.lax.broadcasted_iota(jnp.int32, (w, w_out), 0) * bs
    cols = jax.lax.broadcasted_iota(jnp.int32, (w, w_out), 1)
    x_dtype = x_ref.dtype
    sw = [jnp.where(cols == rows + b2, 1.0, 0.0).astype(x_dtype) for b2 in range(bs)]

    slabs = []
    for b1 in range(bs):
        acc = jnp.dot(x_ref[0, b1 * bs], sw[0], preferred_element_type=acc_dtype)
        for b2 in range(1, bs):
            acc = acc + jnp.dot(x_ref[0, b1 * bs + b2], sw[b2],
                                preferred_element_type=acc_dtype)
        if lane_dense:
            # w_out % 128 == 0: lane-aligned, lane-dense per-slab store; only one
            # accumulator is ever live (cuts peak VMEM/vreg pressure by ~bs x).
            o_ref[0, :, b1 * w_out:(b1 + 1) * w_out] = acc.astype(o_ref.dtype)
        else:
            slabs.append(acc)
    if not lane_dense:
        # Narrow outputs: a single full-width store beats bs masked sub-128-lane
        # partial stores (dominant lever on v5e's single vst slot).
        o_ref[0] = jnp.concatenate(slabs, axis=-1).astype(o_ref.dtype)


def _reference(x, bs):
    """Pure-JAX mirror of the PyTorch forward (view -> permute -> view)."""
    n, c, h, w = x.shape
    y = x.reshape(n, bs, bs, c // bs ** 2, h, w)
    y = jnp.transpose(y, (0, 3, 4, 1, 5, 2))
    return y.reshape(n, c // bs ** 2, h * bs, w * bs)


def depth_to_space(x, block_size):
    n, c, h, w = x.shape
    bs = int(block_size)
    assert c % (bs * bs) == 0, "channels must be divisible by block_size**2"
    if bs == 1:
        return x
    if not jnp.issubdtype(x.dtype, jnp.floating):
        # TODO(synk): integer dtypes need a non-MXU scatter path (f32 one-hot matmul is
        # only exact for |x| < 2^24 and v7x has no integer MXU); use the pure-JAX permute.
        return _reference(x, bs)

    c_out = c // (bs * bs)
    w_out = w * bs
    m = c_out * h                              # fused (out-channel, input-row) dimension
    lane_dense = (w_out % 128 == 0)

    acc_dtype = x.dtype if x.dtype == jnp.bfloat16 else jnp.float32
    item = jnp.dtype(x.dtype).itemsize
    acc_item = jnp.dtype(acc_dtype).itemsize
    granule = _sublane_granule(x.dtype)

    # --- VMEM-budget-aware row tiling ---------------------------------------
    budget = _vmem_budget_bytes()
    fixed = bs * bs * w * w * item                          # in-kernel one-hot matrices
    per_row = 4 * bs * bs * w * item                        # in+out blocks, double-buffered
    per_row += 2 * bs * (1 if lane_dense else bs) * w * acc_item   # live accumulators
    budget_rows = max(1, (budget - fixed) // per_row)
    m_blk = _pick_row_tile(m, granule, budget_rows)

    # v7x has 2 TensorCores sharing HBM: expose >= 2 parallel grid steps so a
    # second core never idles for tiny batches.
    n_m = pl.cdiv(m, m_blk)
    if n * n_m < 2 and m > granule:
        half = ((m + 1) // 2 + granule - 1) // granule * granule
        if granule <= half < m:
            m_blk = half
            n_m = pl.cdiv(m, m_blk)

    # Free row-major reshape: (N, bs*bs*c_out, H, W) -> (N, bs*bs, c_out*H, W).
    x2 = x.reshape(n, bs * bs, m, w)

    kernel = functools.partial(_d2s_kernel, bs=bs, w=w, w_out=w_out,
                               acc_dtype=acc_dtype, lane_dense=lane_dense)

    flops = 2 * n * bs * bs * m * w * w_out                 # one-hot scatter matmuls
    bytes_accessed = 2 * n * c * h * w * item               # HBM-bound: read x + write out

    out = pl.pallas_call(
        kernel,
        out_shape=jax.ShapeDtypeStruct((n, m, bs * w_out), x.dtype),
        grid=(n, n_m),
        in_specs=[pl.BlockSpec((1, bs * bs, m_blk, w), lambda i, mt: (i, 0, mt, 0))],
        out_specs=pl.BlockSpec((1, m_blk, bs * w_out), lambda i, mt: (i, mt, 0)),
        compiler_params=pltpu.CompilerParams(
            dimension_semantics=("parallel", "parallel"),
            vmem_limit_bytes=budget,
        ),
        cost_estimate=pl.CostEstimate(flops=flops, transcendentals=0,
                                      bytes_accessed=bytes_accessed),
    )(x2)

    # Free row-major reshape: (N, c_out*H, bs*W*bs) -> (N, c_out, H*bs, W*bs).
    return out.reshape(n, c_out, h * bs, w_out)


if __name__ == "__main__":
    key = jax.random.PRNGKey(0)
    k1, k2 = jax.random.split(key)

    # Case 1: bs=2, f32 (the original toy spec).
    x1 = jax.random.normal(k1, (2, 8, 16, 16), dtype=jnp.float32)
    out1 = jax.block_until_ready(depth_to_space(x1, 2))
    ref1 = _reference(x1, 2)
    assert out1.shape == ref1.shape, (out1.shape, ref1.shape)
    assert jnp.allclose(out1, ref1), "Pallas DepthToSpace mismatch (bs=2, f32)"

    # Case 2: bs=3, bf16 — validates the (b1, ww, b2) column ordering and the
    # low-precision (bf16-accumulate) path flagged by the review.
    x2 = jax.random.normal(k2, (1, 18, 8, 8), dtype=jnp.bfloat16)
    out2 = jax.block_until_ready(depth_to_space(x2, 3))
    ref2 = _reference(x2, 3)
    assert out2.shape == ref2.shape, (out2.shape, ref2.shape)
    assert jnp.allclose(out2.astype(jnp.float32), ref2.astype(jnp.float32)), \
        "Pallas DepthToSpace mismatch (bs=3, bf16)"

    print("KERNEL_OK")
</pallas_src>

<mosaic_0001>
module attributes {stable_mosaic.version = 11 : i64} {
  func.func @_d2s_kernel(%arg0: i32, %arg1: i32, %arg2: memref<1x4x32x16xf32, #tpu.memory_space<vmem>>, %arg3: memref<1x32x64xf32, #tpu.memory_space<vmem>>) attributes {dimension_semantics = [#tpu.dimension_semantics<parallel>, #tpu.dimension_semantics<parallel>], iteration_bounds = array<i64: 2, 1>, scalar_prefetch = 0 : i64, scratch_operands = 0 : i64, tpu.core_type = #tpu.core_type<tc>, window_params = [{transform_indices = @transform_0, window_bounds = array<i64: 1, 4, 32, 16>}, {transform_indices = @transform_1, window_bounds = array<i64: 1, 32, 64>}]} {
    %0 = tpu.iota {dimensions = array<i32: 0>} : vector<16x32xi32>
    %c2_i32 = arith.constant 2 : i32
    %1 = vector.broadcast %c2_i32 : i32 to vector<16x32xi32>
    %2 = arith.muli %0, %1 : vector<16x32xi32>
    %3 = tpu.iota {dimensions = array<i32: 1>} : vector<16x32xi32>
    %c0_i32 = arith.constant 0 : i32
    %4 = vector.broadcast %c0_i32 : i32 to vector<16x32xi32>
    %5 = arith.addi %2, %4 : vector<16x32xi32>
    %6 = arith.cmpi eq, %3, %5 : vector<16x32xi32>
    %cst = arith.constant 1.000000e+00 : f32
    %cst_0 = arith.constant 0.000000e+00 : f32
    %7 = vector.broadcast %cst : f32 to vector<16x32xf32>
    %8 = vector.broadcast %cst_0 : f32 to vector<16x32xf32>
    %9 = arith.select %6, %7, %8 : vector<16x32xi1>, vector<16x32xf32>
    %c1_i32 = arith.constant 1 : i32
    %10 = vector.broadcast %c1_i32 : i32 to vector<16x32xi32>
    %11 = arith.addi %2, %10 : vector<16x32xi32>
    %12 = arith.cmpi eq, %3, %11 : vector<16x32xi32>
    %cst_1 = arith.constant 1.000000e+00 : f32
    %cst_2 = arith.constant 0.000000e+00 : f32
    %13 = vector.broadcast %cst_1 : f32 to vector<16x32xf32>
    %14 = vector.broadcast %cst_2 : f32 to vector<16x32xf32>
    %15 = arith.select %12, %13, %14 : vector<16x32xi1>, vector<16x32xf32>
    %c0 = arith.constant 0 : index
    %c0_3 = arith.constant 0 : index
    %c0_4 = arith.constant 0 : index
    %c0_5 = arith.constant 0 : index
    %16 = vector.load %arg2[%c0, %c0_3, %c0_4, %c0_5] : memref<1x4x32x16xf32, #tpu.memory_space<vmem>>, vector<1x1x32x16xf32>
    %17 = vector.shape_cast %16 : vector<1x1x32x16xf32> to vector<32x16xf32>
    %cst_6 = arith.constant dense<0.000000e+00> : vector<32x32xf32>
    %18 = tpu.matmul %17, %9, %cst_6 {dimension_numbers = #tpu.dot_dimension_numbers<[1], [0], [0], [1], [0, 0, 1, 1], [], []>} : vector<32x16xf32>, vector<16x32xf32>, vector<32x32xf32> -> vector<32x32xf32>
    %c0_7 = arith.constant 0 : index
    %c1 = arith.constant 1 : index
    %c0_8 = arith.constant 0 : index
    %c0_9 = arith.constant 0 : index
    %19 = vector.load %arg2[%c0_7, %c1, %c0_8, %c0_9] : memref<1x4x32x16xf32, #tpu.memory_space<vmem>>, vector<1x1x32x16xf32>
    %20 = vector.shape_cast %19 : vector<1x1x32x16xf32> to vector<32x16xf32>
    %cst_10 = arith.constant dense<0.000000e+00> : vector<32x32xf32>
    %21 = tpu.matmul %20, %15, %cst_10 {dimension_numbers = #tpu.dot_dimension_numbers<[1], [0], [0], [1], [0, 0, 1, 1], [], []>} : vector<32x16xf32>, vector<16x32xf32>, vector<32x32xf32> -> vector<32x32xf32>
    %22 = arith.addf %18, %21 : vector<32x32xf32>
    %c0_11 = arith.constant 0 : index
    %c2 = arith.constant 2 : index
    %c0_12 = arith.constant 0 : index
    %c0_13 = arith.constant 0 : index
    %23 = vector.load %arg2[%c0_11, %c2, %c0_12, %c0_13] : memref<1x4x32x16xf32, #tpu.memory_space<vmem>>, vector<1x1x32x16xf32>
    %24 = vector.shape_cast %23 : vector<1x1x32x16xf32> to vector<32x16xf32>
    %cst_14 = arith.constant dense<0.000000e+00> : vector<32x32xf32>
    %25 = tpu.matmul %24, %9, %cst_14 {dimension_numbers = #tpu.dot_dimension_numbers<[1], [0], [0], [1], [0, 0, 1, 1], [], []>} : vector<32x16xf32>, vector<16x32xf32>, vector<32x32xf32> -> vector<32x32xf32>
    %c0_15 = arith.constant 0 : index
    %c3 = arith.constant 3 : index
    %c0_16 = arith.constant 0 : index
    %c0_17 = arith.constant 0 : index
    %26 = vector.load %arg2[%c0_15, %c3, %c0_16, %c0_17] : memref<1x4x32x16xf32, #tpu.memory_space<vmem>>, vector<1x1x32x16xf32>
    %27 = vector.shape_cast %26 : vector<1x1x32x16xf32> to vector<32x16xf32>
    %cst_18 = arith.constant dense<0.000000e+00> : vector<32x32xf32>
    %28 = tpu.matmul %27, %15, %cst_18 {dimension_numbers = #tpu.dot_dimension_numbers<[1], [0], [0], [1], [0, 0, 1, 1], [], []>} : vector<32x16xf32>, vector<16x32xf32>, vector<32x32xf32> -> vector<32x32xf32>
    %29 = arith.addf %25, %28 : vector<32x32xf32>
    %30 = tpu.concatenate %22, %29 in 1 : vector<32x32xf32>, vector<32x32xf32> -> vector<32x64xf32>
    %c0_19 = arith.constant 0 : index
    %c0_20 = arith.constant 0 : index
    %c0_21 = arith.constant 0 : index
    %31 = vector.load %arg3[%c0_19, %c0_20, %c0_21] : memref<1x32x64xf32, #tpu.memory_space<vmem>>, vector<1x32x64xf32>
    %32 = vector.shape_cast %31 : vector<1x32x64xf32> to vector<32x64xf32>
    %33 = vector.shape_cast %30 : vector<32x64xf32> to vector<1x32x64xf32>
    tpu.vector_store %arg3[%c0_19, %c0_20, %c0_21], %33 {strides = array<i32>} : memref<1x32x64xf32, #tpu.memory_space<vmem>>, vector<1x32x64xf32>,
    return
  }
  func.func @transform_0(%arg0: i32, %arg1: i32) -> (i32, i32, i32, i32) {
    %c0_i32 = arith.constant 0 : i32
    %c0_i32_0 = arith.constant 0 : i32
    %c0_i32_1 = arith.constant 0 : i32
    return %arg0, %c0_i32, %arg1, %c0_i32_0 : i32, i32, i32, i32
  }
  func.func @transform_1(%arg0: i32, %arg1: i32) -> (i32, i32, i32) {
    %c0_i32 = arith.constant 0 : i32
    %c0_i32_0 = arith.constant 0 : i32
    return %arg0, %arg1, %c0_i32 : i32, i32, i32
  }
}

</mosaic_0001>

<llo_original>
// kernel: tpu_custom_call.1
$region0: #{tpu_custom_call.1}
  #allocation0 [shape = 'u32[]', space=smem, size = 0x4, offset = 0x4, fixed_abs, tag = 'smem constant byte address 0x4 - core index']
  #allocation1 [shape = 'u32[144,128]{1,0:T(1,128)}', space=vmem, size = 0x12000, scoped, tag = 'internal scratch']
  %s0 = inlined_call_operand.vmem [shape: f32[2,4,32,16], index: 0, kind: input, shape index: {}]
  %s1 = inlined_call_operand.hbm [shape: f32[2,32,64], index: 1, kind: output, shape index: {}]
  %s2 = sld [smem:[#allocation0]]
  $region37: #{tpu_custom_call.1} parent=0
    _
  %s4 = ssub.s32 1, %s2
  %s5 = scalar_select 0, %s4, %s2
  $region1: #{tpu_custom_call.1} parent=0
    #allocation2 [shape = 'u8[32768]{0}', space=vmem, size = 0x8000, scoped, tag = 'output window, operand 0']
    #allocation3 [shape = 's32[2]{0}', space=sflag, size = 0x8, scoped, tag = 'scoped memory for tpu_custom_call.1']
    %6 = vsyncpa [#allocation3], 0
    %s7 = scalar_lea.sflag [#allocation3], 1
    %8 = vsyncpa %s7, 0
    loop: start=0, step=1, limit=4
    $region2: #{tpu_custom_call.1} parent=1 // loop_pre_header
      _
    $region3: #{tpu_custom_call.1} parent=1 // loop_header
      %s10 = sphi 0, %s14
      %p11 = scmp.ge.s32.totalorder %s10, 4
      %s17 = sphi 0, %s29
      %s18 = sphi 0, %s25
      %s19 = sphi 0, %s17
      %s20 = sphi 0, %s18
      %s21 = sphi 0, %s19
      %s22 = sphi 0, %s20
      %s34 = sphi 0, %s36
      %s37 = sphi 0, %s34
      %s38 = sphi 0, %s37
      %s54 = sphi 0, %s38
      %s62 = sphi 0, %s64
      %s65 = sphi 0, %s62
      %s66 = sphi 0, %s65
      %s82 = sphi 0, %s66
    $region4: #{tpu_custom_call.1} parent=1 // loop_header_branch
      %13 = sbr.rel (%p11) target = $region8
    $region5: #{tpu_custom_call.1} parent=1 // loop_body
      %s15 = ssub.s32 %s10, 1
      %s16 = ssub.s32 %s10, 2
      %s23 = sadd.s32 1, %s18
      %p24 = scmp.ge.s32.totalorder %s23, 1
      %s25 = scalar_select %p24, 0, %s23
      %s26 = sadd.s32 1, %s17
      %s27 = scalar_select %p24, %s26, %s17
      %p28 = scmp.ge.s32.totalorder %s27, 2
      %s29 = scalar_select %p28, 0, %s27
      %s30 = ssub.s32 %s17, %s29
      %s31 = ssub.s32 %s18, %s25
      %s32 = sor.u32 %s30, %s31
      %p33 = scmp.eq.s32.totalorder %s32, 0
      %s35 = sadd.s32 %s34, 1
      %s36 = scalar_select %p33, %s34, %s35
      %p39 = pneg %p33
      %p40 = scmp.eq.s32.totalorder %s10, 1
      %p41 = por %p39, %p40
      %p42 = scmp.ne.s32.totalorder %s34, %s37
      %p43 = scmp.eq.s32.totalorder %s10, 0
      %p44 = por %p42, %p43
      %p45 = scmp.ne.s32.totalorder %s34, %s37
      %p46 = scmp.eq.s32.totalorder %s15, 1
      %p47 = por %p45, %p46
      %p48 = scmp.ne.s32.totalorder %s37, %s38
      %p49 = scmp.eq.s32.totalorder %s15, 0
      %p50 = por %p48, %p49
      %p51 = scmp.ne.s32.totalorder %s37, %s38
      %p52 = scmp.eq.s32.totalorder %s16, 1
      %p53 = por %p51, %p52
      %p55 = scmp.ne.s32.totalorder %s38, %s54
      %p56 = scmp.eq.s32.totalorder %s16, 0
      %p57 = por %p55, %p56
      %s58 = ssub.s32 %s17, %s29
      %s59 = ssub.s32 %s18, %s25
      %s60 = sor.u32 %s58, %s59
      %p61 = scmp.eq.s32.totalorder %s60, 0
      %s63 = sadd.s32 %s62, 1
      %s64 = scalar_select %p61, %s62, %s63
      %p67 = pneg %p61
      %p68 = scmp.eq.s32.totalorder %s10, 1
      %p69 = por %p67, %p68
      %p70 = scmp.ne.s32.totalorder %s62, %s65
      %p71 = scmp.eq.s32.totalorder %s10, 0
      %p72 = por %p70, %p71
      %p73 = scmp.ne.s32.totalorder %s62, %s65
      %p74 = scmp.eq.s32.totalorder %s15, 1
      %p75 = por %p73, %p74
      %p76 = scmp.ne.s32.totalorder %s65, %s66
      %p77 = scmp.eq.s32.totalorder %s15, 0
      %p78 = por %p76, %p77
      %p79 = scmp.ne.s32.totalorder %s65, %s66
      %p80 = scmp.eq.s32.totalorder %s16, 1
      %p81 = por %p79, %p80
      %p83 = scmp.ne.s32.totalorder %s66, %s82
      %p84 = scmp.eq.s32.totalorder %s16, 0
      %p85 = por %p83, %p84
      %p86 = scmp.le.s32.totalorder 1, %s10
      %p87 = scmp.lt.s32.totalorder %s10, 3
      %p88 = pnand %p86, %p87
      %p89 = pneg %p88
      // Predicated region
      $region9: #{tpu_custom_call.1} parent=5 // pred_check
        _
      $region10: #{tpu_custom_call.1} parent=5 // pred_check_branch
        %91 = sbr.rel (%p88) target = $region12
      $region11: #{tpu_custom_call.1} parent=5 // pred_region
        %s92 = ssub.s32 %s10, 1
      $region12: #{tpu_custom_call.1} parent=5 // pred_fallthru
        _
      %p93 = scmp.lt.s32.totalorder %s10, 2
      // Predicated region
      $region13: #{tpu_custom_call.1} parent=5 // pred_check
        %p94 = pneg %p93
      $region14: #{tpu_custom_call.1} parent=5 // pred_check_branch
        %96 = sbr.rel (%p94) target = $region16
      $region15: #{tpu_custom_call.1} parent=5 // pred_region
        // Predicated region
        $region17: #{tpu_custom_call.1} parent=15 // pred_check
          %p97 = pneg %p44
        $region18: #{tpu_custom_call.1} parent=15 // pred_check_branch
          %99 = sbr.rel (%p97) target = $region20
        $region19: #{tpu_custom_call.1} parent=15 // pred_region
          %s100 = smul.u32 4, %s18
          %p101 = scmp.lt.s32.totalorder %s17, 1
          %s102 = scalar_select %p101, %s17, 1
          %p103 = scmp.lt.s32.totalorder %s100, 3
          %s104 = scalar_select %p103, %s100, 3
          %s105 = smul.addr %s102, 16
          %s106 = sadd.s32 %s104, %s105
          %s107 = smul.addr %s106, 8
          %s108 = scalar_lea.vmem %s0, %s107
          %s109 = smul.u32 4, %s18
        $region20: #{tpu_custom_call.1} parent=15 // pred_fallthru
          _
      $region16: #{tpu_custom_call.1} parent=5 // pred_fallthru
        _
      %p110 = scmp.le.s32.totalorder 1, %s10
      %p111 = scmp.lt.s32.totalorder %s10, 3
      %p112 = pnand %p110, %p111
      %p113 = pneg %p112
      // Predicated region
      $region21: #{tpu_custom_call.1} parent=5 // pred_check
        _
      $region22: #{tpu_custom_call.1} parent=5 // pred_check_branch
        %115 = sbr.rel (%p112) target = $region24
      $region23: #{tpu_custom_call.1} parent=5 // pred_region
        %s116 = ssub.s32 %s10, 1
        %s117 = smul.u32 4, %s20
        %p118 = scmp.lt.s32.totalorder %s19, 1
        %s119 = scalar_select %p118, %s19, 1
        %p120 = scmp.lt.s32.totalorder %s117, 3
        %s121 = scalar_select %p120, %s117, 3
        %s122 = smul.addr %s119, 16
        %s123 = sadd.s32 %s121, %s122
        %s124 = smul.addr %s123, 8
        %s125 = scalar_lea.vmem %s0, %s124
        %p126 = pneg %p50
        %p127 = pneg %p47
        %p128 = pneg %p78
        %p129 = pneg %p75
        %s130 = sand.u32 %s65, 1
        %s131 = scalar_lea.sflag [#allocation3], %s130
        %s132 = sand.u32 %s65, 1
        %s133 = smul.addr %s132, 32
        %s134 = scalar_lea.vmem [#allocation2], %s133
        %s135 = smul.u32 4, %s20
        %p136 = scmp.lt.s32.totalorder %s19, 1
        %s137 = scalar_select %p136, %s19, 1
        %p138 = scmp.lt.s32.totalorder %s135, 3
        %s139 = scalar_select %p138, %s135, 3
        %s140 = smul.addr %s137, 16
        %s141 = sadd.s32 %s139, %s140
        %s142 = smul.addr %s141, 8
        %s143 = scalar_lea.vmem %s0, %s142
        %s144 = smul.u32 4, %s20
        %s145 = smul.u32 4, %s20
        %v146 = vlaneseq
        %v147 = vshrl.u32 %v146, 7
        %v148 = vadd.s32 %v147, 8
        %v149 = vmul.u32 %v147, 2
        %v150 = vmul.u32 %v148, 2
        %v151 = vlaneseq
        %v152 = vand.u32 %v151, 127
        %vm153 = vcmp.eq.s32.totalorder %v152, %v149
        %vm154 = vcmp.eq.s32.totalorder %v152, %v150
        %v155 = vsel %vm153, 1.0, 0.0
        %v156 = vsel %vm154, 1.0, 0.0
        %v157 = vadd.s32 %v149, 1
        %v158 = vadd.s32 %v150, 1
        %vm159 = vcmp.eq.s32.totalorder %v152, %v157
        %vm160 = vcmp.eq.s32.totalorder %v152, %v158
        %v161 = vsel %vm159, 1.0, 0.0
        %v162 = vsel %vm160, 1.0, 0.0
        %v163 = vld [vmem:[%s143] sm:$0xff]
        %v164 = vld [vmem:[%s143 + $0x8] sm:$0xff]
        %v165 = vld [vmem:[%s143 + $0x10] sm:$0xff]
        %v166 = vld [vmem:[%s143 + $0x18] sm:$0xff]
        %s167 = scalar_lea.vmem %s143, 32
        %v168 = vld [vmem:[%s167] sm:$0xff]
        %v169 = vld [vmem:[%s167 + $0x8] sm:$0xff]
        %v170 = vld [vmem:[%s167 + $0x10] sm:$0xff]
        %v171 = vld [vmem:[%s167 + $0x18] sm:$0xff]
        %vm172 = vcmask 130048
        %v174 = vsel %vm172, %v168, 0
        %v177 = vsel %vm172, %v169, 0
        %v180 = vsel %vm172, %v170, 0
        %v183 = vsel %vm172, %v171, 0
        %185 = vmatprep.subr.mxu0 0.0
        %186 = vmatpush1.msra.mxu0 %v161
        %187 = vmatprep.subr.mxu0 0.0
        %188 = vmatpush1.msra.mxu0 %v162
        %189 = vmatprep.subr.mxu0 0.0
        %190 = vmatpush1.msra.mxu0 0.0
        %191 = vmatprep.subr.mxu0 0.0
        %192 = vmatpush1.msra.mxu0 0.0
        %193 = vmatprep.subr.mxu0 0.0
        %194 = vmatpush1.msra.mxu0 0.0
        %195 = vmatprep.subr.mxu0 0.0
        %196 = vmatpush1.msra.mxu0 0.0
        %197 = vmatprep.subr.mxu0 0.0
        %198 = vmatpush1.msra.mxu0 0.0
        %199 = vmatprep.subr.mxu0 0.0
        %200 = vmatpush1.msra.mxu0 0.0
        %201 = vmatprep.subr.mxu0 0.0
        %202 = vmatpush1.msra.mxu0 0.0
        %203 = vmatprep.subr.mxu0 0.0
        %204 = vmatpush1.msra.mxu0 0.0
        %205 = vmatprep.subr.mxu0 0.0
        %206 = vmatpush1.msra.mxu0 0.0
        %207 = vmatprep.subr.mxu0 0.0
        %208 = vmatpush1.msra.mxu0 0.0
        %209 = vmatprep.subr.mxu0 0.0
        %210 = vmatpush1.msra.mxu0 0.0
        %211 = vmatprep.subr.mxu0 0.0
        %212 = vmatpush1.msra.mxu0 0.0
        %213 = vmatprep.subr.mxu0 0.0
        %214 = vmatpush1.msra.mxu0 0.0
        %215 = vmatprep.subr.mxu0 0.0
        %216 = vmatpush1.msra.mxu0 0.0
        %217 = vmatprep.subr.mxu0 0.0
        %218 = vmatpush1.msra.mxu0 0.0
        %219 = vmatprep.subr.mxu0 0.0
        %220 = vmatpush1.msra.mxu0 0.0
        %221 = vmatprep.subr.mxu0 0.0
        %222 = vmatpush1.msra.mxu0 0.0
        %223 = vmatprep.subr.mxu0 0.0
        %224 = vmatpush1.msra.mxu0 0.0
        %225 = vmatprep.subr.mxu0 0.0
        %226 = vmatpush1.msra.mxu0 0.0
        %227 = vmatprep.subr.mxu0 0.0
        %228 = vmatpush1.msra.mxu0 0.0
        %229 = vmatprep.subr.mxu0 0.0
        %230 = vmatpush1.msra.mxu0 0.0
        %231 = vmatprep.subr.mxu0 0.0
        %232 = vmatpush1.msra.mxu0 0.0
        %233 = vmatprep.subr.mxu0 0.0
        %234 = vmatpush1.msra.mxu0 0.0
        %235 = vmatprep.subr.mxu0 0.0
        %236 = vmatpush1.msra.mxu0 0.0
        %237 = vmatprep.subr.mxu0 0.0
        %238 = vmatpush1.msra.mxu0 0.0
        %239 = vmatprep.subr.mxu0 0.0
        %240 = vmatpush1.msra.mxu0 0.0
        %241 = vmatprep.subr.mxu0 0.0
        %242 = vmatpush1.msra.mxu0 0.0
        %243 = vmatprep.subr.mxu0 0.0
        %244 = vmatpush1.msra.mxu0 0.0
        %245 = vmatprep.subr.mxu0 0.0
        %246 = vmatpush1.msra.mxu0 0.0
        %247 = vmatprep.subr.mxu0 0.0
        %248 = vmatpush1.msra.mxu0 0.0
        %249 = vmatprep.mubr.f32.mxu0 0.0
        %250 = vmatmul.mubr.f32.gmra.mrb[0].mxu0 %v174
        %v251 = vpop.f32.mrb[0].mxu0
        %v252 = vadd.f32 0.0, %v251
        %v253 = vpop.f32.mrb[0].mxu0
        %254 = vmatprep.mubr.f32.mxu0 0.0
        %255 = vmatmul.mubr.f32.gmra.mrb[0].mxu0 %v177
        %v256 = vpop.f32.mrb[0].mxu0
        %v257 = vadd.f32 0.0, %v256
        %v258 = vpop.f32.mrb[0].mxu0
        %259 = vmatprep.mubr.f32.mxu0 0.0
        %260 = vmatmul.mubr.f32.gmra.mrb[0].mxu0 %v180
        %v261 = vpop.f32.mrb[0].mxu0
        %v262 = vadd.f32 0.0, %v261
        %v263 = vpop.f32.mrb[0].mxu0
        %264 = vmatprep.mubr.f32.mxu0 0.0
        %265 = vmatmul.mubr.f32.gmra.mrb[0].mxu0 %v183
        %v266 = vpop.f32.mrb[0].mxu0
        %v267 = vadd.f32 0.0, %v266
        %v268 = vpop.f32.mrb[0].mxu0
        %269 = vdwg.mxu0
        %v271 = vsel %vm172, %v163, 0
        %v274 = vsel %vm172, %v164, 0
        %v277 = vsel %vm172, %v165, 0
        %v280 = vsel %vm172, %v166, 0
        %282 = vmatprep.subr.mxu0 0.0
        %283 = vmatpush1.msra.mxu0 %v155
        %284 = vmatprep.subr.mxu0 0.0
        %285 = vmatpush1.msra.mxu0 %v156
        %286 = vmatprep.subr.mxu0 0.0
        %287 = vmatpush1.msra.mxu0 0.0
        %288 = vmatprep.subr.mxu0 0.0
        %289 = vmatpush1.msra.mxu0 0.0
        %290 = vmatprep.subr.mxu0 0.0
        %291 = vmatpush1.msra.mxu0 0.0
        %292 = vmatprep.subr.mxu0 0.0
        %293 = vmatpush1.msra.mxu0 0.0
        %294 = vmatprep.subr.mxu0 0.0
        %295 = vmatpush1.msra.mxu0 0.0
        %296 = vmatprep.subr.mxu0 0.0
        %297 = vmatpush1.msra.mxu0 0.0
        %298 = vmatprep.subr.mxu0 0.0
        %299 = vmatpush1.msra.mxu0 0.0
        %300 = vmatprep.subr.mxu0 0.0
        %301 = vmatpush1.msra.mxu0 0.0
        %302 = vmatprep.subr.mxu0 0.0
        %303 = vmatpush1.msra.mxu0 0.0
        %304 = vmatprep.subr.mxu0 0.0
        %305 = vmatpush1.msra.mxu0 0.0
        %306 = vmatprep.subr.mxu0 0.0
        %307 = vmatpush1.msra.mxu0 0.0
        %308 = vmatprep.subr.mxu0 0.0
        %309 = vmatpush1.msra.mxu0 0.0
        %310 = vmatprep.subr.mxu0 0.0
        %311 = vmatpush1.msra.mxu0 0.0
        %312 = vmatprep.subr.mxu0 0.0
        %313 = vmatpush1.msra.mxu0 0.0
        %314 = vmatprep.subr.mxu0 0.0
        %315 = vmatpush1.msra.mxu0 0.0
        %316 = vmatprep.subr.mxu0 0.0
        %317 = vmatpush1.msra.mxu0 0.0
        %318 = vmatprep.subr.mxu0 0.0
        %319 = vmatpush1.msra.mxu0 0.0
        %320 = vmatprep.subr.mxu0 0.0
        %321 = vmatpush1.msra.mxu0 0.0
        %322 = vmatprep.subr.mxu0 0.0
        %323 = vmatpush1.msra.mxu0 0.0
        %324 = vmatprep.subr.mxu0 0.0
        %325 = vmatpush1.msra.mxu0 0.0
        %326 = vmatprep.subr.mxu0 0.0
        %327 = vmatpush1.msra.mxu0 0.0
        %328 = vmatprep.subr.mxu0 0.0
        %329 = vmatpush1.msra.mxu0 0.0
        %330 = vmatprep.subr.mxu0 0.0
        %331 = vmatpush1.msra.mxu0 0.0
        %332 = vmatprep.subr.mxu0 0.0
        %333 = vmatpush1.msra.mxu0 0.0
        %334 = vmatprep.subr.mxu0 0.0
        %335 = vmatpush1.msra.mxu0 0.0
        %336 = vmatprep.subr.mxu0 0.0
        %337 = vmatpush1.msra.mxu0 0.0
        %338 = vmatprep.subr.mxu0 0.0
        %339 = vmatpush1.msra.mxu0 0.0
        %340 = vmatprep.subr.mxu0 0.0
        %341 = vmatpush1.msra.mxu0 0.0
        %342 = vmatprep.subr.mxu0 0.0
        %343 = vmatpush1.msra.mxu0 0.0
        %344 = vmatprep.subr.mxu0 0.0
        %345 = vmatpush1.msra.mxu0 0.0
        %346 = vmatprep.mubr.f32.mxu0 0.0
        %347 = vmatmul.mubr.f32.gmra.mrb[0].mxu0 %v271
        %v348 = vpop.f32.mrb[0].mxu0
        %v349 = vadd.f32 %v252, %v348
        %v350 = vpop.f32.mrb[0].mxu0
        %351 = vmatprep.mubr.f32.mxu0 0.0
        %352 = vmatmul.mubr.f32.gmra.mrb[0].mxu0 %v274
        %v353 = vpop.f32.mrb[0].mxu0
        %v354 = vadd.f32 %v257, %v353
        %v355 = vpop.f32.mrb[0].mxu0
        %356 = vmatprep.mubr.f32.mxu0 0.0
        %357 = vmatmul.mubr.f32.gmra.mrb[0].mxu0 %v277
        %v358 = vpop.f32.mrb[0].mxu0
        %v359 = vadd.f32 %v262, %v358
        %v360 = vpop.f32.mrb[0].mxu0
        %361 = vmatprep.mubr.f32.mxu0 0.0
        %362 = vmatmul.mubr.f32.gmra.mrb[0].mxu0 %v280
        %v363 = vpop.f32.mrb[0].mxu0
        %v364 = vadd.f32 %v267, %v363
        %v365 = vpop.f32.mrb[0].mxu0
        %366 = vdwg.mxu0
        %s367 = scalar_lea.vmem %s143, 64
        %v368 = vld [vmem:[%s367] sm:$0xff]
        %v369 = vld [vmem:[%s367 + $0x8] sm:$0xff]
        %v370 = vld [vmem:[%s367 + $0x10] sm:$0xff]
        %v371 = vld [vmem:[%s367 + $0x18] sm:$0xff]
        %s372 = scalar_lea.vmem %s143, 96
        %v373 = vld [vmem:[%s372] sm:$0xff]
        %v374 = vld [vmem:[%s372 + $0x8] sm:$0xff]
        %v375 = vld [vmem:[%s372 + $0x10] sm:$0xff]
        %v376 = vld [vmem:[%s372 + $0x18] sm:$0xff]
        %v378 = vsel %vm172, %v373, 0
        %v381 = vsel %vm172, %v374, 0
        %v384 = vsel %vm172, %v375, 0
        %v387 = vsel %vm172, %v376, 0
        %389 = vmatprep.subr.mxu0 0.0
        %390 = vmatpush1.msra.mxu0 %v161
        %391 = vmatprep.subr.mxu0 0.0
        %392 = vmatpush1.msra.mxu0 %v162
        %393 = vmatprep.subr.mxu0 0.0
        %394 = vmatpush1.msra.mxu0 0.0
        %395 = vmatprep.subr.mxu0 0.0
        %396 = vmatpush1.msra.mxu0 0.0
        %397 = vmatprep.subr.mxu0 0.0
        %398 = vmatpush1.msra.mxu0 0.0
        %399 = vmatprep.subr.mxu0 0.0
        %400 = vmatpush1.msra.mxu0 0.0
        %401 = vmatprep.subr.mxu0 0.0
        %402 = vmatpush1.msra.mxu0 0.0
        %403 = vmatprep.subr.mxu0 0.0
        %404 = vmatpush1.msra.mxu0 0.0
        %405 = vmatprep.subr.mxu0 0.0
        %406 = vmatpush1.msra.mxu0 0.0
        %407 = vmatprep.subr.mxu0 0.0
        %408 = vmatpush1.msra.mxu0 0.0
        %409 = vmatprep.subr.mxu0 0.0
        %410 = vmatpush1.msra.mxu0 0.0
        %411 = vmatprep.subr.mxu0 0.0
        %412 = vmatpush1.msra.mxu0 0.0
        %413 = vmatprep.subr.mxu0 0.0
        %414 = vmatpush1.msra.mxu0 0.0
        %415 = vmatprep.subr.mxu0 0.0
        %416 = vmatpush1.msra.mxu0 0.0
        %417 = vmatprep.subr.mxu0 0.0
        %418 = vmatpush1.msra.mxu0 0.0
        %419 = vmatprep.subr.mxu0 0.0
        %420 = vmatpush1.msra.mxu0 0.0
        %421 = vmatprep.subr.mxu0 0.0
        %422 = vmatpush1.msra.mxu0 0.0
        %423 = vmatprep.subr.mxu0 0.0
        %424 = vmatpush1.msra.mxu0 0.0
        %425 = vmatprep.subr.mxu0 0.0
        %426 = vmatpush1.msra.mxu0 0.0
        %427 = vmatprep.subr.mxu0 0.0
        %428 = vmatpush1.msra.mxu0 0.0
        %429 = vmatprep.subr.mxu0 0.0
        %430 = vmatpush1.msra.mxu0 0.0
        %431 = vmatprep.subr.mxu0 0.0
        %432 = vmatpush1.msra.mxu0 0.0
        %433 = vmatprep.subr.mxu0 0.0
        %434 = vmatpush1.msra.mxu0 0.0
        %435 = vmatprep.subr.mxu0 0.0
        %436 = vmatpush1.msra.mxu0 0.0
        %437 = vmatprep.subr.mxu0 0.0
        %438 = vmatpush1.msra.mxu0 0.0
        %439 = vmatprep.subr.mxu0 0.0
        %440 = vmatpush1.msra.mxu0 0.0
        %441 = vmatprep.subr.mxu0 0.0
        %442 = vmatpush1.msra.mxu0 0.0
        %443 = vmatprep.subr.mxu0 0.0
        %444 = vmatpush1.msra.mxu0 0.0
        %445 = vmatprep.subr.mxu0 0.0
        %446 = vmatpush1.msra.mxu0 0.0
        %447 = vmatprep.subr.mxu0 0.0
        %448 = vmatpush1.msra.mxu0 0.0
        %449 = vmatprep.subr.mxu0 0.0
        %450 = vmatpush1.msra.mxu0 0.0
        %451 = vmatprep.subr.mxu0 0.0
        %452 = vmatpush1.msra.mxu0 0.0
        %453 = vmatprep.mubr.f32.mxu0 0.0
        %454 = vmatmul.mubr.f32.gmra.mrb[0].mxu0 %v378
        %v455 = vpop.f32.mrb[0].mxu0
        %v456 = vadd.f32 0.0, %v455
        %v457 = vpop.f32.mrb[0].mxu0
        %458 = vmatprep.mubr.f32.mxu0 0.0
        %459 = vmatmul.mubr.f32.gmra.mrb[0].mxu0 %v381
        %v460 = vpop.f32.mrb[0].mxu0
        %v461 = vadd.f32 0.0, %v460
        %v462 = vpop.f32.mrb[0].mxu0
        %463 = vmatprep.mubr.f32.mxu0 0.0
        %464 = vmatmul.mubr.f32.gmra.mrb[0].mxu0 %v384
        %v465 = vpop.f32.mrb[0].mxu0
        %v466 = vadd.f32 0.0, %v465
        %v467 = vpop.f32.mrb[0].mxu0
        %468 = vmatprep.mubr.f32.mxu0 0.0
        %469 = vmatmul.mubr.f32.gmra.mrb[0].mxu0 %v387
        %v470 = vpop.f32.mrb[0].mxu0
        %v471 = vadd.f32 0.0, %v470
        %v472 = vpop.f32.mrb[0].mxu0
        %473 = vdwg.mxu0
        %v475 = vsel %vm172, %v368, 0
        %v478 = vsel %vm172, %v369, 0
        %v481 = vsel %vm172, %v370, 0
        %v484 = vsel %vm172, %v371, 0
        %486 = vmatprep.subr.mxu0 0.0
        %487 = vmatpush1.msra.mxu0 %v155
        %488 = vmatprep.subr.mxu0 0.0
        %489 = vmatpush1.msra.mxu0 %v156
        %490 = vmatprep.subr.mxu0 0.0
        %491 = vmatpush1.msra.mxu0 0.0
        %492 = vmatprep.subr.mxu0 0.0
        %493 = vmatpush1.msra.mxu0 0.0
        %494 = vmatprep.subr.mxu0 0.0
        %495 = vmatpush1.msra.mxu0 0.0
        %496 = vmatprep.subr.mxu0 0.0
        %497 = vmatpush1.msra.mxu0 0.0
        %498 = vmatprep.subr.mxu0 0.0
        %499 = vmatpush1.msra.mxu0 0.0
        %500 = vmatprep.subr.mxu0 0.0
        %501 = vmatpush1.msra.mxu0 0.0
        %502 = vmatprep.subr.mxu0 0.0
        %503 = vmatpush1.msra.mxu0 0.0
        %504 = vmatprep.subr.mxu0 0.0
        %505 = vmatpush1.msra.mxu0 0.0
        %506 = vmatprep.subr.mxu0 0.0
        %507 = vmatpush1.msra.mxu0 0.0
        %508 = vmatprep.subr.mxu0 0.0
        %509 = vmatpush1.msra.mxu0 0.0
        %510 = vmatprep.subr.mxu0 0.0
        %511 = vmatpush1.msra.mxu0 0.0
        %512 = vmatprep.subr.mxu0 0.0
        %513 = vmatpush1.msra.mxu0 0.0
        %514 = vmatprep.subr.mxu0 0.0
        %515 = vmatpush1.msra.mxu0 0.0
        %516 = vmatprep.subr.mxu0 0.0
        %517 = vmatpush1.msra.mxu0 0.0
        %518 = vmatprep.subr.mxu0 0.0
        %519 = vmatpush1.msra.mxu0 0.0
        %520 = vmatprep.subr.mxu0 0.0
        %521 = vmatpush1.msra.mxu0 0.0
        %522 = vmatprep.subr.mxu0 0.0
        %523 = vmatpush1.msra.mxu0 0.0
        %524 = vmatprep.subr.mxu0 0.0
        %525 = vmatpush1.msra.mxu0 0.0
        %526 = vmatprep.subr.mxu0 0.0
        %527 = vmatpush1.msra.mxu0 0.0
        %528 = vmatprep.subr.mxu0 0.0
        %529 = vmatpush1.msra.mxu0 0.0
        %530 = vmatprep.subr.mxu0 0.0
        %531 = vmatpush1.msra.mxu0 0.0
        %532 = vmatprep.subr.mxu0 0.0
        %533 = vmatpush1.msra.mxu0 0.0
        %534 = vmatprep.subr.mxu0 0.0
        %535 = vmatpush1.msra.mxu0 0.0
        %536 = vmatprep.subr.mxu0 0.0
        %537 = vmatpush1.msra.mxu0 0.0
        %538 = vmatprep.subr.mxu0 0.0
        %539 = vmatpush1.msra.mxu0 0.0
        %540 = vmatprep.subr.mxu0 0.0
        %541 = vmatpush1.msra.mxu0 0.0
        %542 = vmatprep.subr.mxu0 0.0
        %543 = vmatpush1.msra.mxu0 0.0
        %544 = vmatprep.subr.mxu0 0.0
        %545 = vmatpush1.msra.mxu0 0.0
        %546 = vmatprep.subr.mxu0 0.0
        %547 = vmatpush1.msra.mxu0 0.0
        %548 = vmatprep.subr.mxu0 0.0
        %549 = vmatpush1.msra.mxu0 0.0
        %550 = vmatprep.mubr.f32.mxu0 0.0
        %551 = vmatmul.mubr.f32.gmra.mrb[0].mxu0 %v475
        %v552 = vpop.f32.mrb[0].mxu0
        %v553 = vadd.f32 %v456, %v552
        %v554 = vpop.f32.mrb[0].mxu0
        %555 = vmatprep.mubr.f32.mxu0 0.0
        %556 = vmatmul.mubr.f32.gmra.mrb[0].mxu0 %v478
        %v557 = vpop.f32.mrb[0].mxu0
        %v558 = vadd.f32 %v461, %v557
        %v559 = vpop.f32.mrb[0].mxu0
        %560 = vmatprep.mubr.f32.mxu0 0.0
        %561 = vmatmul.mubr.f32.gmra.mrb[0].mxu0 %v481
        %v562 = vpop.f32.mrb[0].mxu0
        %v563 = vadd.f32 %v466, %v562
        %v564 = vpop.f32.mrb[0].mxu0
        %565 = vmatprep.mubr.f32.mxu0 0.0
        %566 = vmatmul.mubr.f32.gmra.mrb[0].mxu0 %v484
        %v567 = vpop.f32.mrb[0].mxu0
        %v568 = vadd.f32 %v471, %v567
        %v569 = vpop.f32.mrb[0].mxu0
        %570 = vdwg.mxu0
        %575 = vrot.lane.b32.xlu0 %v553, 32
        %v576 = vpop.permute.xlu0 %575
        %577 = vrot.lane.b32.xlu0 %v558, 32
        %v578 = vpop.permute.xlu0 %577
        %579 = vrot.lane.b32.xlu0 %v563, 32
        %v580 = vpop.permute.xlu0 %579
        %581 = vrot.lane.b32.xlu0 %v568, 32
        %v582 = vpop.permute.xlu0 %581
        %vm587 = vcmask 261120
        %v588 = vsel %vm587, %v349, %v576
        %v589 = vsel %vm587, %v354, %v578
        %v590 = vsel %vm587, %v359, %v580
        %v591 = vsel %vm587, %v364, %v582
        %vm592 = vcmask 523264
        %593 = vst.msk [vmem:[%s134] sm:$0xff] %vm592, %v588
        %594 = vst.msk [vmem:[%s134 + $0x8] sm:$0xff] %vm592, %v589
        %595 = vst.msk [vmem:[%s134 + $0x10] sm:$0xff] %vm592, %v590
        %596 = vst.msk [vmem:[%s134 + $0x18] sm:$0xff] %vm592, %v591
        %s597 = sand.u32 %s65, 1
        %s598 = scalar_lea.sflag [#allocation3], %s597
        %s599 = sand.u32 %s65, 1
        %s600 = smul.addr %s599, 32
        %s601 = scalar_lea.vmem [#allocation2], %s600
        // Predicated region
        $region25: #{tpu_custom_call.1} parent=23 // pred_check
          %p602 = pneg %p75
        $region26: #{tpu_custom_call.1} parent=23 // pred_check_branch
          %604 = sbr.rel (%p602) target = $region28
        $region27: #{tpu_custom_call.1} parent=23 // pred_region
          %s605 = smul.u32 4, %s20
          %s607 = ssub.s32 512, 512
          %608 = vsyncadd %s598, %s607
          %s609 = smul.addr %s19, 4
          %s610 = sadd.s32 %s605, %s609
          %s611 = smul.addr %s610, 128
          %s612 = scalar_lea.hbm %s1, %s611
          %s613 = sshll.u32 %s601, 4
          %s614 = int_to_ptr.vmem [resolvable:$true] %s613
          %619 = dma.vmem_to_hbm [thread:$0]  %s614, 512, %s612, %s598, 128, 128, 8
        $region28: #{tpu_custom_call.1} parent=23 // pred_fallthru
          _
      $region24: #{tpu_custom_call.1} parent=5 // pred_fallthru
        _
      %p620 = scmp.le.s32.totalorder 2, %s10
      // Predicated region
      $region29: #{tpu_custom_call.1} parent=5 // pred_check
        %p621 = pneg %p620
      $region30: #{tpu_custom_call.1} parent=5 // pred_check_branch
        %623 = sbr.rel (%p621) target = $region32
      $region31: #{tpu_custom_call.1} parent=5 // pred_region
        %s624 = ssub.s32 %s10, 2
        // Predicated region
        $region33: #{tpu_custom_call.1} parent=31 // pred_check
          %p625 = pneg %p81
        $region34: #{tpu_custom_call.1} parent=31 // pred_check_branch
          %627 = sbr.rel (%p625) target = $region36
        $region35: #{tpu_custom_call.1} parent=31 // pred_region
          %s628 = sand.u32 %s66, 1
          %s629 = scalar_lea.sflag [#allocation3], %s628
          %s630 = sand.u32 %s66, 1
          %s631 = smul.addr %s630, 32
          %s632 = scalar_lea.vmem [#allocation2], %s631
          %633 = dma.done %s629, 512
        $region36: #{tpu_custom_call.1} parent=31 // pred_fallthru
          _
      $region32: #{tpu_custom_call.1} parent=5 // pred_fallthru
        _
    $region6: #{tpu_custom_call.1} parent=1 // loop_footer
      %s14 = sadd.s32 1, %s10
    $region7: #{tpu_custom_call.1} parent=1 // loop_footer_branch
      %9 = sbr.rel target = $region3
    $region8: #{tpu_custom_call.1} parent=1 // loop_exit
      _
    %634 = vsyncpa [#allocation3], 1
    %s635 = scalar_lea.sflag [#allocation3], 1
    %636 = vsyncpa %s635, 1

</llo_original>
